<compile_context>
chip_gen: v7x
topology: tpu7x:2x2x1
jax: 0.10.0
libtpu: 0.0.40
codegen_flags: <defaults>
</compile_context>

<pallas_src>
import functools

import jax
import jax.numpy as jnp
from jax.experimental import pallas as pl
from jax.experimental.pallas import tpu as pltpu

_BN_EPS = 1e-5


def _round_up(x, m):
    return (x + m - 1) // m * m


def _fc_block_kernel(x_ref, w_ref, b_ref, gamma_ref, beta_ref, o_ref, acc_ref,
                     *, use_tanh, inv_b):
    k = pl.program_id(1)

    @pl.when(k == 0)
    def _():
        acc_ref[...] = jnp.zeros_like(acc_ref)

    # (B, tk) @ (tk, tn) on the MXU, bf16 inputs, f32 accumulation.
    acc_ref[...] += jnp.dot(x_ref[...], w_ref[...],
                            preferred_element_type=jnp.float32)

    @pl.when(k == pl.num_programs(1) - 1)
    def _():
        y = acc_ref[...] + b_ref[...]                       # (B, tn) f32

        # Batch stats via sum / sum-of-squares (axis-0 sublane reductions -> XLU).
        s = jnp.sum(y, axis=0, keepdims=True)
        ss = jnp.sum(y * y, axis=0, keepdims=True)
        mean = s * inv_b
        var = ss * inv_b - mean * mean                      # biased var (PyTorch train mode)

        # Fold BN affine into one scale/shift: z = y * scale + shift.
        inv_std = jax.lax.rsqrt(var + _BN_EPS)
        scale = gamma_ref[...] * inv_std
        shift = beta_ref[...] - mean * scale
        z = y * scale + shift

        if use_tanh:
            z = jnp.tanh(z)                                 # f32 tanh (EUP), cast only at store
        else:
            z = jnp.maximum(z, 0.0)

        o_ref[...] = z.astype(o_ref.dtype)


def fc_block(x, w, b, gamma, beta, *, use_tanh=False, tn=256, tk=256):
    """x: (B, F_in); w: (F_in, F_out); b/gamma/beta: (F_out,). Returns (B, F_out) in x.dtype."""
    B, F_in = x.shape
    F_out = w.shape[1]

    # Lane-aligned tiles (multiples of 128), capped by the padded problem dims.
    tk = min(tk, _round_up(F_in, 128))
    tn = min(tn, _round_up(F_out, 128))
    F_in_p = _round_up(F_in, tk)
    F_out_p = _round_up(F_out, tn)

    # Zero-pad K and N (zeros contribute nothing to the matmul; padded output columns are
    # sliced off). The batch dim B is never padded -> BN stats are exact.
    xp = jnp.pad(x, ((0, 0), (0, F_in_p - F_in))).astype(jnp.bfloat16)
    wp = jnp.pad(w, ((0, F_in_p - F_in), (0, F_out_p - F_out))).astype(jnp.bfloat16)
    bp = jnp.pad(b, (0, F_out_p - F_out)).astype(jnp.float32).reshape(1, F_out_p)
    gp = jnp.pad(gamma, (0, F_out_p - F_out)).astype(jnp.float32).reshape(1, F_out_p)
    bep = jnp.pad(beta, (0, F_out_p - F_out)).astype(jnp.float32).reshape(1, F_out_p)

    grid = (F_out_p // tn, F_in_p // tk)

    # VMEM budget (double-buffered bf16 x/w tiles, f32 out tile + accumulator, small vectors).
    vmem_bytes = (2 * (B * tk + tk * tn) * 2
                  + 2 * B * tn * 4
                  + B * tn * 4
                  + 3 * 2 * tn * 4)
    vmem_limit = int(max(32 * 1024 * 1024, min(64 * 1024 * 1024, 2 * vmem_bytes)))

    cost = pl.CostEstimate(
        flops=2 * B * F_in_p * F_out_p,
        transcendentals=B * F_out_p if use_tanh else 0,
        bytes_accessed=2 * (B * F_in_p + F_in_p * F_out_p) + 4 * B * F_out_p,
    )

    kernel = functools.partial(_fc_block_kernel, use_tanh=use_tanh, inv_b=1.0 / B)

    out = pl.pallas_call(
        kernel,
        out_shape=jax.ShapeDtypeStruct((B, F_out_p), x.dtype),
        grid_spec=pltpu.PrefetchScalarGridSpec(
            num_scalar_prefetch=0,
            grid=grid,
            in_specs=[
                pl.BlockSpec((B, tk), lambda n, k: (0, k)),     # x tile
                pl.BlockSpec((tk, tn), lambda n, k: (k, n)),    # w tile
                pl.BlockSpec((1, tn), lambda n, k: (0, n)),     # bias
                pl.BlockSpec((1, tn), lambda n, k: (0, n)),     # gamma
                pl.BlockSpec((1, tn), lambda n, k: (0, n)),     # beta
            ],
            out_specs=pl.BlockSpec((B, tn), lambda n, k: (0, n)),
            scratch_shapes=[pltpu.VMEM((B, tn), jnp.float32)],
        ),
        compiler_params=pltpu.CompilerParams(
            dimension_semantics=("parallel", "arbitrary"),
            vmem_limit_bytes=vmem_limit,
        ),
        cost_estimate=cost,
    )(xp, wp, bp, gp, bep)

    return out[:, :F_out] if F_out_p != F_out else out


def _reference(x, w, b, gamma, beta, use_tanh):
    # Matches kernel precision: bf16 matmul inputs, f32 accumulation, f32 BN/activation.
    y = jnp.dot(x.astype(jnp.bfloat16), w.astype(jnp.bfloat16),
                preferred_element_type=jnp.float32) + b
    mean = y.mean(axis=0, keepdims=True)
    var = ((y - mean) ** 2).mean(axis=0, keepdims=True)
    z = (y - mean) / jnp.sqrt(var + _BN_EPS) * gamma + beta
    return jnp.tanh(z) if use_tanh else jnp.maximum(z, 0.0)


if __name__ == "__main__":
    key = jax.random.PRNGKey(0)

    def run_case(B, F_IN, F_OUT, tn, tk):
        kx, kw, kb = jax.random.split(jax.random.fold_in(key, F_IN * 1000 + F_OUT), 3)
        x = jax.random.normal(kx, (B, F_IN), dtype=jnp.float32)
        bound = 1.0 / (F_IN ** 0.5)
        w = jax.random.uniform(kw, (F_IN, F_OUT), minval=-bound, maxval=bound, dtype=jnp.float32)
        b = jax.random.uniform(kb, (F_OUT,), minval=-bound, maxval=bound, dtype=jnp.float32)
        gamma = jnp.ones((F_OUT,), dtype=jnp.float32)   # BatchNorm1d weight init
        beta = jnp.zeros((F_OUT,), dtype=jnp.float32)   # BatchNorm1d bias init

        out_relu = jax.block_until_ready(
            fc_block(x, w, b, gamma, beta, use_tanh=False, tn=tn, tk=tk))
        out_tanh = jax.block_until_ready(
            fc_block(x, w, b, gamma, beta, use_tanh=True, tn=tn, tk=tk))

        ref_relu = _reference(x, w, b, gamma, beta, use_tanh=False)
        ref_tanh = _reference(x, w, b, gamma, beta, use_tanh=True)
        assert out_relu.shape == (B, F_OUT) and out_tanh.shape == (B, F_OUT)
        assert jnp.allclose(out_relu, ref_relu, atol=5e-4, rtol=5e-4)
        assert jnp.allclose(out_tanh, ref_tanh, atol=5e-4, rtol=5e-4)

    # Lane-aligned case exercising the full 2x2 grid (N-parallel, K-accumulated).
    run_case(B=16, F_IN=256, F_OUT=256, tn=128, tk=128)
    # Unaligned F_in/F_out exercising the zero-pad + slice path.
    run_case(B=16, F_IN=96, F_OUT=192, tn=128, tk=128)

    print("KERNEL_OK")
</pallas_src>

<mosaic_0001>
module attributes {stable_mosaic.version = 11 : i64} {
  func.func @_fc_block_kernel(%arg0: i32, %arg1: i32, %arg2: memref<16x128xbf16, #tpu.memory_space<vmem>>, %arg3: memref<128x128xbf16, #tpu.memory_space<vmem>>, %arg4: memref<1x128xf32, #tpu.memory_space<vmem>>, %arg5: memref<1x128xf32, #tpu.memory_space<vmem>>, %arg6: memref<1x128xf32, #tpu.memory_space<vmem>>, %arg7: memref<16x128xf32, #tpu.memory_space<vmem>>, %arg8: memref<16x128xf32, #tpu.memory_space<vmem>>) attributes {dimension_semantics = [#tpu.dimension_semantics<parallel>, #tpu.dimension_semantics<arbitrary>], iteration_bounds = array<i64: 2, 2>, scalar_prefetch = 0 : i64, scratch_operands = 1 : i64, tpu.core_type = #tpu.core_type<tc>, window_params = [{transform_indices = @transform_0, window_bounds = array<i64: 16, 128>}, {transform_indices = @transform_1, window_bounds = array<i64: 128, 128>}, {transform_indices = @transform_2, window_bounds = array<i64: 1, 128>}, {transform_indices = @transform_3, window_bounds = array<i64: 1, 128>}, {transform_indices = @transform_4, window_bounds = array<i64: 1, 128>}, {transform_indices = @transform_5, window_bounds = array<i64: 16, 128>}]} {
    %c0_i32 = arith.constant 0 : i32
    %0 = arith.cmpi eq, %arg1, %c0_i32 : i32
    %1 = arith.extui %0 : i1 to i32
    %c0_i32_0 = arith.constant 0 : i32
    %2 = arith.cmpi ne, %1, %c0_i32_0 : i32
    scf.if %2 {
      %cst_9 = arith.constant 0.000000e+00 : f32
      %12 = vector.broadcast %cst_9 : f32 to vector<16x128xf32>
      %c0_10 = arith.constant 0 : index
      %c0_11 = arith.constant 0 : index
      %13 = vector.load %arg8[%c0_10, %c0_11] : memref<16x128xf32, #tpu.memory_space<vmem>>, vector<16x128xf32>
      tpu.vector_store %arg8[%c0_10, %c0_11], %12 {strides = array<i32>} : memref<16x128xf32, #tpu.memory_space<vmem>>, vector<16x128xf32>,
    } else {
    }
    %c0 = arith.constant 0 : index
    %c0_1 = arith.constant 0 : index
    %3 = vector.load %arg8[%c0, %c0_1] : memref<16x128xf32, #tpu.memory_space<vmem>>, vector<16x128xf32>
    %c0_2 = arith.constant 0 : index
    %c0_3 = arith.constant 0 : index
    %4 = vector.load %arg2[%c0_2, %c0_3] : memref<16x128xbf16, #tpu.memory_space<vmem>>, vector<16x128xbf16>
    %c0_4 = arith.constant 0 : index
    %c0_5 = arith.constant 0 : index
    %5 = vector.load %arg3[%c0_4, %c0_5] : memref<128x128xbf16, #tpu.memory_space<vmem>>, vector<128x128xbf16>
    %cst = arith.constant dense<0.000000e+00> : vector<16x128xf32>
    %6 = tpu.matmul %4, %5, %cst {dimension_numbers = #tpu.dot_dimension_numbers<[1], [0], [0], [1], [0, 0, 1, 1], [], []>} : vector<16x128xbf16>, vector<128x128xbf16>, vector<16x128xf32> -> vector<16x128xf32>
    %7 = arith.addf %3, %6 : vector<16x128xf32>
    %c0_6 = arith.constant 0 : index
    %c0_7 = arith.constant 0 : index
    %8 = vector.load %arg8[%c0_6, %c0_7] : memref<16x128xf32, #tpu.memory_space<vmem>>, vector<16x128xf32>
    tpu.vector_store %arg8[%c0_6, %c0_7], %7 {strides = array<i32>} : memref<16x128xf32, #tpu.memory_space<vmem>>, vector<16x128xf32>,
    %c1_i32 = arith.constant 1 : i32
    %9 = arith.cmpi eq, %arg1, %c1_i32 : i32
    %10 = arith.extui %9 : i1 to i32
    %c0_i32_8 = arith.constant 0 : i32
    %11 = arith.cmpi ne, %10, %c0_i32_8 : i32
    scf.if %11 {
      %c0_9 = arith.constant 0 : index
      %c0_10 = arith.constant 0 : index
      %12 = vector.load %arg8[%c0_9, %c0_10] : memref<16x128xf32, #tpu.memory_space<vmem>>, vector<16x128xf32>
      %c0_11 = arith.constant 0 : index
      %c0_12 = arith.constant 0 : index
      %13 = vector.load %arg4[%c0_11, %c0_12] : memref<1x128xf32, #tpu.memory_space<vmem>>, vector<1x128xf32>
      %14 = vector.broadcast %13 : vector<1x128xf32> to vector<16x128xf32>
      %15 = arith.addf %12, %14 : vector<16x128xf32>
      %cst_13 = arith.constant dense<0.000000e+00> : vector<128xf32>
      %16 = vector.multi_reduction <add>, %15, %cst_13 [0] : vector<16x128xf32> to vector<128xf32>
      %17 = vector.shape_cast %16 : vector<128xf32> to vector<1x128xf32>
      %18 = arith.mulf %15, %15 : vector<16x128xf32>
      %cst_14 = arith.constant dense<0.000000e+00> : vector<128xf32>
      %19 = vector.multi_reduction <add>, %18, %cst_14 [0] : vector<16x128xf32> to vector<128xf32>
      %20 = vector.shape_cast %19 : vector<128xf32> to vector<1x128xf32>
      %cst_15 = arith.constant 6.250000e-02 : f32
      %21 = vector.broadcast %cst_15 : f32 to vector<1x128xf32>
      %22 = arith.mulf %17, %21 : vector<1x128xf32>
      %cst_16 = arith.constant 6.250000e-02 : f32
      %23 = vector.broadcast %cst_16 : f32 to vector<1x128xf32>
      %24 = arith.mulf %20, %23 : vector<1x128xf32>
      %25 = arith.mulf %22, %22 : vector<1x128xf32>
      %26 = arith.subf %24, %25 : vector<1x128xf32>
      %cst_17 = arith.constant 9.99999974E-6 : f32
      %27 = vector.broadcast %cst_17 : f32 to vector<1x128xf32>
      %28 = arith.addf %26, %27 : vector<1x128xf32>
      %29 = math.rsqrt %28 : vector<1x128xf32>
      %c0_18 = arith.constant 0 : index
      %c0_19 = arith.constant 0 : index
      %30 = vector.load %arg5[%c0_18, %c0_19] : memref<1x128xf32, #tpu.memory_space<vmem>>, vector<1x128xf32>
      %31 = arith.mulf %30, %29 : vector<1x128xf32>
      %c0_20 = arith.constant 0 : index
      %c0_21 = arith.constant 0 : index
      %32 = vector.load %arg6[%c0_20, %c0_21] : memref<1x128xf32, #tpu.memory_space<vmem>>, vector<1x128xf32>
      %33 = arith.mulf %22, %31 : vector<1x128xf32>
      %34 = arith.subf %32, %33 : vector<1x128xf32>
      %35 = vector.broadcast %31 : vector<1x128xf32> to vector<16x128xf32>
      %36 = arith.mulf %15, %35 : vector<16x128xf32>
      %37 = vector.broadcast %34 : vector<1x128xf32> to vector<16x128xf32>
      %38 = arith.addf %36, %37 : vector<16x128xf32>
      %cst_22 = arith.constant 0.000000e+00 : f32
      %39 = vector.broadcast %cst_22 : f32 to vector<16x128xf32>
      %40 = arith.maximumf %38, %39 : vector<16x128xf32>
      %c0_23 = arith.constant 0 : index
      %c0_24 = arith.constant 0 : index
      %41 = vector.load %arg7[%c0_23, %c0_24] : memref<16x128xf32, #tpu.memory_space<vmem>>, vector<16x128xf32>
      tpu.vector_store %arg7[%c0_23, %c0_24], %40 {strides = array<i32>} : memref<16x128xf32, #tpu.memory_space<vmem>>, vector<16x128xf32>,
    } else {
    }
    return
  }
  func.func @transform_0(%arg0: i32, %arg1: i32) -> (i32, i32) {
    %c0_i32 = arith.constant 0 : i32
    %c0_i32_0 = arith.constant 0 : i32
    return %c0_i32, %arg1 : i32, i32
  }
  func.func @transform_1(%arg0: i32, %arg1: i32) -> (i32, i32) {
    %c0_i32 = arith.constant 0 : i32
    return %arg1, %arg0 : i32, i32
  }
  func.func @transform_2(%arg0: i32, %arg1: i32) -> (i32, i32) {
    %c0_i32 = arith.constant 0 : i32
    %c0_i32_0 = arith.constant 0 : i32
    return %c0_i32, %arg0 : i32, i32
  }
  func.func @transform_3(%arg0: i32, %arg1: i32) -> (i32, i32) {
    %c0_i32 = arith.constant 0 : i32
    %c0_i32_0 = arith.constant 0 : i32
    return %c0_i32, %arg0 : i32, i32
  }
  func.func @transform_4(%arg0: i32, %arg1: i32) -> (i32, i32) {
    %c0_i32 = arith.constant 0 : i32
    %c0_i32_0 = arith.constant 0 : i32
    return %c0_i32, %arg0 : i32, i32
  }
  func.func @transform_5(%arg0: i32, %arg1: i32) -> (i32, i32) {
    %c0_i32 = arith.constant 0 : i32
    %c0_i32_0 = arith.constant 0 : i32
    return %c0_i32, %arg0 : i32, i32
  }
}

</mosaic_0001>

<llo_original>
// kernel: tpu_custom_call.1
$region0: #{tpu_custom_call.1}
  #allocation0 [shape = 'u32[]', space=smem, size = 0x4, offset = 0x4, fixed_abs, tag = 'smem constant byte address 0x4 - core index']
  #allocation1 [shape = 'u32[144,128]{1,0:T(1,128)}', space=vmem, size = 0x12000, scoped, tag = 'internal scratch']
  #allocation2 [shape = 'f32[16,128]{1,0:T(8,128)}', space=vmem, size = 0x2000, scoped, tag = 'scratch operand']
  %s0 = inlined_call_operand.hbm [shape: bf16[16,256], index: 0, kind: input, shape index: {}]
  %s1 = inlined_call_operand.hbm [shape: bf16[256,256], index: 1, kind: input, shape index: {}]
  %s2 = inlined_call_operand.vmem [shape: f32[1,256], index: 2, kind: input, shape index: {}]
  %s3 = inlined_call_operand.vmem [shape: f32[1,256], index: 3, kind: input, shape index: {}]
  %s4 = inlined_call_operand.vmem [shape: f32[1,256], index: 4, kind: input, shape index: {}]
  %s5 = inlined_call_operand.hbm [shape: f32[16,256], index: 5, kind: output, shape index: {}]
  %s6 = sld [smem:[#allocation0]]
  $region69: #{tpu_custom_call.1} parent=0
    _
  %s8 = ssub.s32 1, %s6
  %s9 = scalar_select 0, %s8, %s6
  $region1: #{tpu_custom_call.1} parent=0
    #allocation3 [shape = 'u8[8192]{0}', space=vmem, size = 0x2000, scoped, tag = 'input window, operand 0']
    #allocation4 [shape = 's32[2]{0}', space=sflag, size = 0x8, scoped, tag = 'scoped memory for tpu_custom_call.1']
    #allocation5 [shape = 's32[2]{0}', space=sflag, size = 0x8, scoped, tag = 'scoped memory for tpu_custom_call.1']
    #allocation6 [shape = 'u8[65536]{0}', space=vmem, size = 0x10000, scoped, tag = 'input window, operand 1']
    #allocation7 [shape = 's32[2]{0}', space=sflag, size = 0x8, scoped, tag = 'scoped memory for tpu_custom_call.1']
    #allocation8 [shape = 'u8[16384]{0}', space=vmem, size = 0x4000, scoped, tag = 'output window, operand 0']
    %10 = vsyncpa [#allocation4], 0
    %s11 = scalar_lea.sflag [#allocation4], 1
    %12 = vsyncpa %s11, 0
    %13 = vsyncpa [#allocation7], 0
    %s14 = scalar_lea.sflag [#allocation7], 1
    %15 = vsyncpa %s14, 0
    %16 = vsyncpa [#allocation5], 0
    %s17 = scalar_lea.sflag [#allocation5], 1
    %18 = vsyncpa %s17, 0
    loop: start=0, step=1, limit=6
    $region2: #{tpu_custom_call.1} parent=1 // loop_pre_header
      _
    $region3: #{tpu_custom_call.1} parent=1 // loop_header
      %s20 = sphi 0, %s24
      %p21 = scmp.ge.s32.totalorder %s20, 6
      %s27 = sphi 0, %s39
      %s28 = sphi 0, %s35
      %s29 = sphi 0, %s27
      %s30 = sphi 0, %s28
      %s31 = sphi 0, %s29
      %s32 = sphi 0, %s30
      %s42 = sphi 0, %s44
      %s45 = sphi 0, %s42
      %s46 = sphi 0, %s45
      %s62 = sphi 0, %s46
      %s70 = sphi 0, %s72
      %s73 = sphi 0, %s70
      %s74 = sphi 0, %s73
      %s90 = sphi 0, %s74
      %s96 = sphi 0, %s98
      %s99 = sphi 0, %s96
      %s100 = sphi 0, %s99
      %s116 = sphi 0, %s100
      %s122 = sphi 0, %s124
      %s125 = sphi 0, %s122
      %s126 = sphi 0, %s125
      %s142 = sphi 0, %s126
      %s148 = sphi 0, %s150
      %s151 = sphi 0, %s148
      %s152 = sphi 0, %s151
      %s168 = sphi 0, %s152
      %s174 = sphi 0, %s176
      %s177 = sphi 0, %s174
      %s178 = sphi 0, %s177
      %s194 = sphi 0, %s178
    $region4: #{tpu_custom_call.1} parent=1 // loop_header_branch
      %23 = sbr.rel (%p21) target = $region8
    $region5: #{tpu_custom_call.1} parent=1 // loop_body
      %s25 = ssub.s32 %s20, 1
      %s26 = ssub.s32 %s20, 2
      %s33 = sadd.s32 1, %s28
      %p34 = scmp.ge.s32.totalorder %s33, 2
      %s35 = scalar_select %p34, 0, %s33
      %s36 = sadd.s32 1, %s27
      %s37 = scalar_select %p34, %s36, %s27
      %p38 = scmp.ge.s32.totalorder %s37, 2
      %s39 = scalar_select %p38, 0, %s37
      %s40 = ssub.s32 %s28, %s35
      %p41 = scmp.eq.s32.totalorder %s40, 0
      %s43 = sadd.s32 %s42, 1
      %s44 = scalar_select %p41, %s42, %s43
      %p47 = pneg %p41
      %p48 = scmp.eq.s32.totalorder %s20, 3
      %p49 = por %p47, %p48
      %p50 = scmp.ne.s32.totalorder %s42, %s45
      %p51 = scmp.eq.s32.totalorder %s20, 0
      %p52 = por %p50, %p51
      %p53 = scmp.ne.s32.totalorder %s42, %s45
      %p54 = scmp.eq.s32.totalorder %s25, 3
      %p55 = por %p53, %p54
      %p56 = scmp.ne.s32.totalorder %s45, %s46
      %p57 = scmp.eq.s32.totalorder %s25, 0
      %p58 = por %p56, %p57
      %p59 = scmp.ne.s32.totalorder %s45, %s46
      %p60 = scmp.eq.s32.totalorder %s26, 3
      %p61 = por %p59, %p60
      %p63 = scmp.ne.s32.totalorder %s46, %s62
      %p64 = scmp.eq.s32.totalorder %s26, 0
      %p65 = por %p63, %p64
      %s66 = ssub.s32 %s28, %s35
      %s67 = ssub.s32 %s27, %s39
      %s68 = sor.u32 %s66, %s67
      %p69 = scmp.eq.s32.totalorder %s68, 0
      %s71 = sadd.s32 %s70, 1
      %s72 = scalar_select %p69, %s70, %s71
      %p75 = pneg %p69
      %p76 = scmp.eq.s32.totalorder %s20, 3
      %p77 = por %p75, %p76
      %p78 = scmp.ne.s32.totalorder %s70, %s73
      %p79 = scmp.eq.s32.totalorder %s20, 0
      %p80 = por %p78, %p79
      %p81 = scmp.ne.s32.totalorder %s70, %s73
      %p82 = scmp.eq.s32.totalorder %s25, 3
      %p83 = por %p81, %p82
      %p84 = scmp.ne.s32.totalorder %s73, %s74
      %p85 = scmp.eq.s32.totalorder %s25, 0
      %p86 = por %p84, %p85
      %p87 = scmp.ne.s32.totalorder %s73, %s74
      %p88 = scmp.eq.s32.totalorder %s26, 3
      %p89 = por %p87, %p88
      %p91 = scmp.ne.s32.totalorder %s74, %s90
      %p92 = scmp.eq.s32.totalorder %s26, 0
      %p93 = por %p91, %p92
      %s94 = ssub.s32 %s27, %s39
      %p95 = scmp.eq.s32.totalorder %s94, 0
      %s97 = sadd.s32 %s96, 1
      %s98 = scalar_select %p95, %s96, %s97
      %p101 = pneg %p95
      %p102 = scmp.eq.s32.totalorder %s20, 3
      %p103 = por %p101, %p102
      %p104 = scmp.ne.s32.totalorder %s96, %s99
      %p105 = scmp.eq.s32.totalorder %s20, 0
      %p106 = por %p104, %p105
      %p107 = scmp.ne.s32.totalorder %s96, %s99
      %p108 = scmp.eq.s32.totalorder %s25, 3
      %p109 = por %p107, %p108
      %p110 = scmp.ne.s32.totalorder %s99, %s100
      %p111 = scmp.eq.s32.totalorder %s25, 0
      %p112 = por %p110, %p111
      %p113 = scmp.ne.s32.totalorder %s99, %s100
      %p114 = scmp.eq.s32.totalorder %s26, 3
      %p115 = por %p113, %p114
      %p117 = scmp.ne.s32.totalorder %s100, %s116
      %p118 = scmp.eq.s32.totalorder %s26, 0
      %p119 = por %p117, %p118
      %s120 = ssub.s32 %s27, %s39
      %p121 = scmp.eq.s32.totalorder %s120, 0
      %s123 = sadd.s32 %s122, 1
      %s124 = scalar_select %p121, %s122, %s123
      %p127 = pneg %p121
      %p128 = scmp.eq.s32.totalorder %s20, 3
      %p129 = por %p127, %p128
      %p130 = scmp.ne.s32.totalorder %s122, %s125
      %p131 = scmp.eq.s32.totalorder %s20, 0
      %p132 = por %p130, %p131
      %p133 = scmp.ne.s32.totalorder %s122, %s125
      %p134 = scmp.eq.s32.totalorder %s25, 3
      %p135 = por %p133, %p134
      %p136 = scmp.ne.s32.totalorder %s125, %s126
      %p137 = scmp.eq.s32.totalorder %s25, 0
      %p138 = por %p136, %p137
      %p139 = scmp.ne.s32.totalorder %s125, %s126
      %p140 = scmp.eq.s32.totalorder %s26, 3
      %p141 = por %p139, %p140
      %p143 = scmp.ne.s32.totalorder %s126, %s142
      %p144 = scmp.eq.s32.totalorder %s26, 0
      %p145 = por %p143, %p144
      %s146 = ssub.s32 %s27, %s39
      %p147 = scmp.eq.s32.totalorder %s146, 0
      %s149 = sadd.s32 %s148, 1
      %s150 = scalar_select %p147, %s148, %s149
      %p153 = pneg %p147
      %p154 = scmp.eq.s32.totalorder %s20, 3
      %p155 = por %p153, %p154
      %p156 = scmp.ne.s32.totalorder %s148, %s151
      %p157 = scmp.eq.s32.totalorder %s20, 0
      %p158 = por %p156, %p157
      %p159 = scmp.ne.s32.totalorder %s148, %s151
      %p160 = scmp.eq.s32.totalorder %s25, 3
      %p161 = por %p159, %p160
      %p162 = scmp.ne.s32.totalorder %s151, %s152
      %p163 = scmp.eq.s32.totalorder %s25, 0
      %p164 = por %p162, %p163
      %p165 = scmp.ne.s32.totalorder %s151, %s152
      %p166 = scmp.eq.s32.totalorder %s26, 3
      %p167 = por %p165, %p166
      %p169 = scmp.ne.s32.totalorder %s152, %s168
      %p170 = scmp.eq.s32.totalorder %s26, 0
      %p171 = por %p169, %p170
      %s172 = ssub.s32 %s27, %s39
      %p173 = scmp.eq.s32.totalorder %s172, 0
      %s175 = sadd.s32 %s174, 1
      %s176 = scalar_select %p173, %s174, %s175
      %p179 = pneg %p173
      %p180 = scmp.eq.s32.totalorder %s20, 3
      %p181 = por %p179, %p180
      %p182 = scmp.ne.s32.totalorder %s174, %s177
      %p183 = scmp.eq.s32.totalorder %s20, 0
      %p184 = por %p182, %p183
      %p185 = scmp.ne.s32.totalorder %s174, %s177
      %p186 = scmp.eq.s32.totalorder %s25, 3
      %p187 = por %p185, %p186
      %p188 = scmp.ne.s32.totalorder %s177, %s178
      %p189 = scmp.eq.s32.totalorder %s25, 0
      %p190 = por %p188, %p189
      %p191 = scmp.ne.s32.totalorder %s177, %s178
      %p192 = scmp.eq.s32.totalorder %s26, 3
      %p193 = por %p191, %p192
      %p195 = scmp.ne.s32.totalorder %s178, %s194
      %p196 = scmp.eq.s32.totalorder %s26, 0
      %p197 = por %p195, %p196
      %p198 = scmp.le.s32.totalorder 1, %s20
      %p199 = scmp.lt.s32.totalorder %s20, 5
      %p200 = pnand %p198, %p199
      %p201 = pneg %p200
      // Predicated region
      $region9: #{tpu_custom_call.1} parent=5 // pred_check
        _
      $region10: #{tpu_custom_call.1} parent=5 // pred_check_branch
        %203 = sbr.rel (%p200) target = $region12
      $region11: #{tpu_custom_call.1} parent=5 // pred_region
        %s204 = ssub.s32 %s20, 1
      $region12: #{tpu_custom_call.1} parent=5 // pred_fallthru
        _
      %p205 = scmp.lt.s32.totalorder %s20, 4
      // Predicated region
      $region13: #{tpu_custom_call.1} parent=5 // pred_check
        %p206 = pneg %p205
      $region14: #{tpu_custom_call.1} parent=5 // pred_check_branch
        %208 = sbr.rel (%p206) target = $region16
      $region15: #{tpu_custom_call.1} parent=5 // pred_region
        // Predicated region
        $region17: #{tpu_custom_call.1} parent=15 // pred_check
          %p209 = pneg %p52
        $region18: #{tpu_custom_call.1} parent=15 // pred_check_branch
          %211 = sbr.rel (%p209) target = $region20
        $region19: #{tpu_custom_call.1} parent=15 // pred_region
          %s212 = sand.u32 %s42, 1
          %s213 = scalar_lea.sflag [#allocation4], %s212
          %s214 = sand.u32 %s42, 1
          %s215 = smul.addr %s214, 8
          %s216 = scalar_lea.vmem [#allocation3], %s215
          %s218 = ssub.s32 128, 128
          %219 = vsyncadd %s213, %s218
          %s220 = smul.addr %s28, 64
          %s221 = scalar_lea.hbm %s0, %s220
          %s222 = sshll.u32 %s216, 4
          %s223 = int_to_ptr.vmem [resolvable:$true] %s222
          %228 = dma.hbm_to_vmem [thread:$0]  %s221, 128, %s223, %s213, 128, 64, 4
        $region20: #{tpu_custom_call.1} parent=15 // pred_fallthru
          _
        // Predicated region
        $region21: #{tpu_custom_call.1} parent=15 // pred_check
          %p229 = pneg %p80
        $region22: #{tpu_custom_call.1} parent=15 // pred_check_branch
          %231 = sbr.rel (%p229) target = $region24
        $region23: #{tpu_custom_call.1} parent=15 // pred_region
          %s232 = sand.u32 %s70, 1
          %s233 = scalar_lea.sflag [#allocation7], %s232
          %s234 = sand.u32 %s70, 1
          %s235 = smul.addr %s234, 64
          %s236 = scalar_lea.vmem [#allocation6], %s235
          %s237 = smul.u32 16, %s28
          %s239 = ssub.s32 1024, 1024
          %240 = vsyncadd %s233, %s239
          %s241 = smul.addr %s237, 2
          %s242 = sadd.s32 %s27, %s241
          %s243 = smul.addr %s242, 64
          %s244 = scalar_lea.hbm %s1, %s243
          %s245 = sshll.u32 %s236, 4
          %s246 = int_to_ptr.vmem [resolvable:$true] %s245
          %251 = dma.hbm_to_vmem [thread:$0]  %s244, 1024, %s246, %s233, 128, 64, 4
        $region24: #{tpu_custom_call.1} parent=15 // pred_fallthru
          _
        // Predicated region
        $region25: #{tpu_custom_call.1} parent=15 // pred_check
          %p252 = pneg %p106
        $region26: #{tpu_custom_call.1} parent=15 // pred_check_branch
          %254 = sbr.rel (%p252) target = $region28
        $region27: #{tpu_custom_call.1} parent=15 // pred_region
          %p255 = scmp.lt.s32.totalorder %s27, 1
          %s256 = scalar_select %p255, %s27, 1
          %s257 = scalar_lea.vmem %s2, %s256
        $region28: #{tpu_custom_call.1} parent=15 // pred_fallthru
          _
        // Predicated region
        $region29: #{tpu_custom_call.1} parent=15 // pred_check
          %p258 = pneg %p132
        $region30: #{tpu_custom_call.1} parent=15 // pred_check_branch
          %260 = sbr.rel (%p258) target = $region32
        $region31: #{tpu_custom_call.1} parent=15 // pred_region
          %p261 = scmp.lt.s32.totalorder %s27, 1
          %s262 = scalar_select %p261, %s27, 1
          %s263 = scalar_lea.vmem %s3, %s262
        $region32: #{tpu_custom_call.1} parent=15 // pred_fallthru
          _
        // Predicated region
        $region33: #{tpu_custom_call.1} parent=15 // pred_check
          %p264 = pneg %p158
        $region34: #{tpu_custom_call.1} parent=15 // pred_check_branch
          %266 = sbr.rel (%p264) target = $region36
        $region35: #{tpu_custom_call.1} parent=15 // pred_region
          %p267 = scmp.lt.s32.totalorder %s27, 1
          %s268 = scalar_select %p267, %s27, 1
          %s269 = scalar_lea.vmem %s4, %s268
        $region36: #{tpu_custom_call.1} parent=15 // pred_fallthru
          _
      $region16: #{tpu_custom_call.1} parent=5 // pred_fallthru
        _
      %p270 = scmp.le.s32.totalorder 1, %s20
      %p271 = scmp.lt.s32.totalorder %s20, 5
      %p272 = pnand %p270, %p271
      %p273 = pneg %p272
      // Predicated region
      $region37: #{tpu_custom_call.1} parent=5 // pred_check
        _
      $region38: #{tpu_custom_call.1} parent=5 // pred_check_branch
        %275 = sbr.rel (%p272) target = $region40
      $region39: #{tpu_custom_call.1} parent=5 // pred_region
        %s276 = ssub.s32 %s20, 1
        %s277 = sand.u32 %s45, 1
        %s278 = scalar_lea.sflag [#allocation4], %s277
        %s279 = sand.u32 %s45, 1
        %s280 = smul.addr %s279, 8
        %s281 = scalar_lea.vmem [#allocation3], %s280
        // Predicated region
        $region41: #{tpu_custom_call.1} parent=39 // pred_check
          %p282 = pneg %p58
        $region42: #{tpu_custom_call.1} parent=39 // pred_check_branch
          %284 = sbr.rel (%p282) target = $region44
        $region43: #{tpu_custom_call.1} parent=39 // pred_region
          %285 = dma.done %s278, 128
        $region44: #{tpu_custom_call.1} parent=39 // pred_fallthru
          _
        %s286 = sand.u32 %s73, 1
        %s287 = scalar_lea.sflag [#allocation7], %s286
        %s288 = sand.u32 %s73, 1
        %s289 = smul.addr %s288, 64
        %s290 = scalar_lea.vmem [#allocation6], %s289
        // Predicated region
        $region45: #{tpu_custom_call.1} parent=39 // pred_check
          %p291 = pneg %p86
        $region46: #{tpu_custom_call.1} parent=39 // pred_check_branch
          %293 = sbr.rel (%p291) target = $region48
        $region47: #{tpu_custom_call.1} parent=39 // pred_region
          %294 = dma.done %s287, 1024
        $region48: #{tpu_custom_call.1} parent=39 // pred_fallthru
          _
        %s295 = sand.u32 %s45, 1
        %s296 = scalar_lea.sflag [#allocation4], %s295
        %s297 = sand.u32 %s45, 1
        %s298 = smul.addr %s297, 8
        %s299 = scalar_lea.vmem [#allocation3], %s298
        %p300 = pneg %p58
        %p301 = pneg %p55
        %s302 = sand.u32 %s73, 1
        %s303 = scalar_lea.sflag [#allocation7], %s302
        %s304 = sand.u32 %s73, 1
        %s305 = smul.addr %s304, 64
        %s306 = scalar_lea.vmem [#allocation6], %s305
        %p307 = pneg %p86
        %p308 = pneg %p83
        %p309 = scmp.lt.s32.totalorder %s29, 1
        %s310 = scalar_select %p309, %s29, 1
        %s311 = scalar_lea.vmem %s2, %s310
        %p312 = pneg %p112
        %p313 = pneg %p109
        %p314 = scmp.lt.s32.totalorder %s29, 1
        %s315 = scalar_select %p314, %s29, 1
        %s316 = scalar_lea.vmem %s3, %s315
        %p317 = pneg %p138
        %p318 = pneg %p135
        %p319 = scmp.lt.s32.totalorder %s29, 1
        %s320 = scalar_select %p319, %s29, 1
        %s321 = scalar_lea.vmem %s4, %s320
        %p322 = pneg %p164
        %p323 = pneg %p161
        %p324 = pneg %p190
        %p325 = pneg %p187
        %s326 = sand.u32 %s177, 1
        %s327 = scalar_lea.sflag [#allocation5], %s326
        %s328 = sand.u32 %s177, 1
        %s329 = smul.addr %s328, 16
        %s330 = scalar_lea.vmem [#allocation8], %s329
        %s331 = smul.u32 16, %s30
        %p332 = scmp.lt.s32.totalorder %s29, 1
        %s333 = scalar_select %p332, %s29, 1
        %s334 = scalar_lea.vmem %s2, %s333
        %p335 = scmp.lt.s32.totalorder %s29, 1
        %s336 = scalar_select %p335, %s29, 1
        %s337 = scalar_lea.vmem %s3, %s336
        %p338 = scmp.lt.s32.totalorder %s29, 1
        %s339 = scalar_select %p338, %s29, 1
        %s340 = scalar_lea.vmem %s4, %s339
        %p342 = scmp.eq.s32.totalorder %s30, 0
        // Predicated region
        $region49: #{tpu_custom_call.1} parent=39 // pred_check
          %p343 = pneg %p342
        $region50: #{tpu_custom_call.1} parent=39 // pred_check_branch
          %345 = sbr.rel (%p343) target = $region52
        $region51: #{tpu_custom_call.1} parent=39 // pred_region
          %346 = vst [vmem:[#allocation2] sm:$0xff] 0.0
          %347 = vst [vmem:[#allocation2 + $0x8] sm:$0xff] 0.0
        $region52: #{tpu_custom_call.1} parent=39 // pred_fallthru
          _
        %v348 = vld [vmem:[#allocation2] sm:$0xff]
        %v349 = vld [vmem:[#allocation2 + $0x8] sm:$0xff]
        %v350 = vld [vmem:[%s281] sm:$0xf]
        %v351 = vld [vmem:[%s281 + $0x4] sm:$0xf]
        %v352 = vld [vmem:[%s290] sm:$0xf]
        %v353 = vld [vmem:[%s290 + $0x4] sm:$0xf]
        %v354 = vld [vmem:[%s290 + $0x8] sm:$0xf]
        %v355 = vld [vmem:[%s290 + $0xc] sm:$0xf]
        %v356 = vld [vmem:[%s290 + $0x10] sm:$0xf]
        %v357 = vld [vmem:[%s290 + $0x14] sm:$0xf]
        %v358 = vld [vmem:[%s290 + $0x18] sm:$0xf]
        %v359 = vld [vmem:[%s290 + $0x1c] sm:$0xf]
        %v360 = vld [vmem:[%s290 + $0x20] sm:$0xf]
        %v361 = vld [vmem:[%s290 + $0x24] sm:$0xf]
        %v362 = vld [vmem:[%s290 + $0x28] sm:$0xf]
        %v363 = vld [vmem:[%s290 + $0x2c] sm:$0xf]
        %v364 = vld [vmem:[%s290 + $0x30] sm:$0xf]
        %v365 = vld [vmem:[%s290 + $0x34] sm:$0xf]
        %v366 = vld [vmem:[%s290 + $0x38] sm:$0xf]
        %v367 = vld [vmem:[%s290 + $0x3c] sm:$0xf]
        %v370 = vunpack.c.l.b16 %v350
        %v371 = vunpack.c.l.b16 %v351
        %v372 = vpack.c.b16 %v371, %v370
        %v390 = vunpack.c.l.b16 %v352
        %v391 = vunpack.c.l.b16 %v353
        %v392 = vunpack.c.l.b16 %v354
        %v393 = vunpack.c.l.b16 %v355
        %v394 = vunpack.c.l.b16 %v356
        %v395 = vunpack.c.l.b16 %v357
        %v396 = vunpack.c.l.b16 %v358
        %v397 = vunpack.c.l.b16 %v359
        %v398 = vunpack.c.l.b16 %v360
        %v399 = vunpack.c.l.b16 %v361
        %v400 = vunpack.c.l.b16 %v362
        %v401 = vunpack.c.l.b16 %v363
        %v402 = vunpack.c.l.b16 %v364
        %v403 = vunpack.c.l.b16 %v365
        %v404 = vunpack.c.l.b16 %v366
        %v405 = vunpack.c.l.b16 %v367
        %v406 = vpack.c.b16 %v391, %v390
        %v407 = vpack.c.b16 %v393, %v392
        %v408 = vpack.c.b16 %v395, %v394
        %v409 = vpack.c.b16 %v397, %v396
        %v410 = vpack.c.b16 %v399, %v398
        %v411 = vpack.c.b16 %v401, %v400
        %v412 = vpack.c.b16 %v403, %v402
        %v413 = vpack.c.b16 %v405, %v404
        %422 = vmatprep.subr.bf16.mxu0 0
        %423 = vmatpush1.bf16.msra.mxu0 %v406
        %424 = vmatprep.subr.bf16.mxu0 0
        %425 = vmatpush1.bf16.msra.mxu0 %v407
        %426 = vmatprep.subr.bf16.mxu0 0
        %427 = vmatpush1.bf16.msra.mxu0 %v408
        %428 = vmatprep.subr.bf16.mxu0 0
        %429 = vmatpush1.bf16.msra.mxu0 %v409
        %430 = vmatprep.subr.bf16.mxu0 0
        %431 = vmatpush1.bf16.msra.mxu0 %v410
        %432 = vmatprep.subr.bf16.mxu0 0
        %433 = vmatpush1.bf16.msra.mxu0 %v411
        %434 = vmatprep.subr.bf16.mxu0 0
        %435 = vmatpush1.bf16.msra.mxu0 %v412
        %436 = vmatprep.subr.bf16.mxu0 0
        %437 = vmatpush1.bf16.msra.mxu0 %v413
        %438 = vmatprep.subr.bf16.mxu0 0
        %439 = vmatpush1.bf16.msra.mxu0 0
        %440 = vmatprep.subr.bf16.mxu0 0
        %441 = vmatpush1.bf16.msra.mxu0 0
        %442 = vmatprep.subr.bf16.mxu0 0
        %443 = vmatpush1.bf16.msra.mxu0 0
        %444 = vmatprep.subr.bf16.mxu0 0
        %445 = vmatpush1.bf16.msra.mxu0 0
        %446 = vmatprep.subr.bf16.mxu0 0
        %447 = vmatpush1.bf16.msra.mxu0 0
        %448 = vmatprep.subr.bf16.mxu0 0
        %449 = vmatpush1.bf16.msra.mxu0 0
        %450 = vmatprep.subr.bf16.mxu0 0
        %451 = vmatpush1.bf16.msra.mxu0 0
        %452 = vmatprep.subr.bf16.mxu0 0
        %453 = vmatpush1.bf16.msra.mxu0 0
        %454 = vmatprep.mubr.bf16.mxu0 0
        %455 = vmatmul.mubr.bf16.gmra.mrb[0].mxu0 %v372
        %v456 = vpop.f32.mrb[0].mxu0
        %v457 = vadd.f32 0.0, %v456
        %v458 = vpop.f32.mrb[0].mxu0
        %v459 = vpop.f32.mrb[0].mxu0
        %v460 = vadd.f32 0.0, %v459
        %v461 = vpop.f32.mrb[0].mxu0
        %462 = vdwg.mxu0
        %v463 = vadd.f32 %v348, %v457
        %v464 = vadd.f32 %v349, %v460
        %465 = vst [vmem:[#allocation2] sm:$0xff] %v463
        %466 = vst [vmem:[#allocation2 + $0x8] sm:$0xff] %v464
        %p467 = scmp.eq.s32.totalorder %s30, 1
        // Predicated region
        $region53: #{tpu_custom_call.1} parent=39 // pred_check
          %p468 = pneg %p467
        $region54: #{tpu_custom_call.1} parent=39 // pred_check_branch
          %470 = sbr.rel (%p468) target = $region56
        $region55: #{tpu_custom_call.1} parent=39 // pred_region
          %v471 = vld [vmem:[#allocation2] sm:$0xff]
          %v472 = vld [vmem:[#allocation2 + $0x8] sm:$0xff]
          %v473 = vld [vmem:[%s334] sm:$0x1]
          %v475 = vlaneseq
          %v476 = vshrl.u32 %v475, 7
          %v477 = vsub.s32 0, %v476
          %v478 = vrot.slane %v473, %v477
          %v480 = vadd.f32 %v471, %v478
          %v481 = vadd.f32 %v472, %v478
          %v482 = vadd.f32 %v480, %v481
          %v483 = vrot.slane %v482, 4
          %v484 = vadd.f32 %v482, %v483
          %v485 = vrot.slane %v484, 2
          %v486 = vadd.f32 %v484, %v485
          %v487 = vrot.slane %v486, 1
          %v488 = vadd.f32 %v486, %v487
          %v489 = vmul.f32 %v480, %v480
          %v490 = vmul.f32 %v481, %v481
          %v491 = vadd.f32 %v489, %v490
          %v492 = vrot.slane %v491, 4
          %v493 = vadd.f32 %v491, %v492
          %v494 = vrot.slane %v493, 2
          %v495 = vadd.f32 %v493, %v494
          %v496 = vrot.slane %v495, 1
          %v497 = vadd.f32 %v495, %v496
          %v498 = vmul.f32 %v488, 0.0625
          %v499 = vmul.f32 %v497, 0.0625
          %v500 = vmul.f32 %v498, %v498
          %v501 = vsub.f32 %v499, %v500
          %v502 = vadd.f32 %v501, 1e-05
          %v503 = vrsqrt.pop %v502
          %v504 = vld [vmem:[%s337] sm:$0x1]
          %v505 = vmul.f32 %v504, %v503
          %v506 = vld [vmem:[%s340] sm:$0x1]
          %v507 = vmul.f32 %v498, %v505
          %v508 = vsub.f32 %v506, %v507
          %v510 = vlaneseq
          %v511 = vshrl.u32 %v510, 7
          %v512 = vsub.s32 0, %v511
          %v513 = vrot.slane %v505, %v512
          %v515 = vmul.f32 %v480, %v513
          %v516 = vmul.f32 %v481, %v513
          %v518 = vlaneseq
          %v519 = vshrl.u32 %v518, 7
          %v520 = vsub.s32 0, %v519
          %v521 = vrot.slane %v508, %v520
          %v523 = vadd.f32 %v515, %v521
          %v524 = vadd.f32 %v516, %v521
          %v525 = vmax.f32 %v523, 0.0
          %v526 = vmax.f32 %v524, 0.0
          %527 = vst [vmem:[%s330] sm:$0xff] %v525
          %528 = vst [vmem:[%s330 + $0x8] sm:$0xff] %v526
        $region56: #{tpu_custom_call.1} parent=39 // pred_fallthru
          _
        %s529 = sand.u32 %s177, 1
        %s530 = scalar_lea.sflag [#allocation5], %s529
        %s531 = sand.u32 %s177, 1
        %s532 = smul.addr %s531, 16
        %s533 = scalar_lea.vmem [#allocation8], %s532
        // Predicated region
        $region57: #{tpu_custom_call.1} parent=39 // pred_check
          %p534 = pneg %p187
        $region58: #{tpu_custom_call.1} parent=39 // pred_check_branch
          %536 = sbr.rel (%p534) target = $region60
        $region59: #{tpu_custom_call.1} parent=39 // pred_region
          %s538 = ssub.s32 256, 256
          %539 = vsyncadd %s530, %s538
          %s540 = smul.addr %s29, 128
          %s541 = scalar_lea.hbm %s5, %s540
          %s542 = sshll.u32 %s533, 4
          %s543 = int_to_ptr.vmem [resolvable:$true] %s542
          %548 = dma.vmem_to_hbm [thread:$0]  %s543, 256, %s541, %s530, 128, 256, 8
        $region60: #{tpu_custom_call.1} parent=39 // pred_fallthru
          _
      $region40: #{tpu_custom_call.1} parent=5 // pred_fallthru
        _
      %p549 = scmp.le.s32.totalorder 2, %s20
      // Predicated region
      $region61: #{tpu_custom_call.1} parent=5 // pred_check
        %p550 = pneg %p549
      $region62: #{tpu_custom_call.1} parent=5 // pred_check_branch
        %552 = sbr.rel (%p550) target = $region64
      $region63: #{tpu_custom_call.1} parent=5 // pred_region
        %s553 = ssub.s32 %s20, 2
        // Predicated region
        $region65: #{tpu_custom_call.1} parent=63 // pred_check
          %p554 = pneg %p193
        $region66: #{tpu_custom_call.1} parent=63 // pred_check_branch
          %556 = sbr.rel (%p554) target = $region68
        $region67: #{tpu_custom_call.1} parent=63 // pred_region
          %s557 = sand.u32 %s178, 1
          %s558 = scalar_lea.sflag [#allocation5], %s557
          %s559 = sand.u32 %s178, 1
          %s560 = smul.addr %s559, 16
          %s561 = scalar_lea.vmem [#allocation8], %s560
          %562 = dma.done %s558, 256
        $region68: #{tpu_custom_call.1} parent=63 // pred_fallthru
          _
      $region64: #{tpu_custom_call.1} parent=5 // pred_fallthru
        _
    $region6: #{tpu_custom_call.1} parent=1 // loop_footer
      %s24 = sadd.s32 1, %s20
    $region7: #{tpu_custom_call.1} parent=1 // loop_footer_branch
      %19 = sbr.rel target = $region3
    $region8: #{tpu_custom_call.1} parent=1 // loop_exit
      _
    %563 = vsyncpa [#allocation4], 1
    %s564 = scalar_lea.sflag [#allocation4], 1
    %565 = vsyncpa %s564, 1
    %566 = vsyncpa [#allocation7], 1
    %s567 = scalar_lea.sflag [#allocation7], 1
    %568 = vsyncpa %s567, 1
    %569 = vsyncpa [#allocation5], 1
    %s570 = scalar_lea.sflag [#allocation5], 1
    %571 = vsyncpa %s570, 1

</llo_original>
